<compile_context>
chip_gen: v6e
topology: v6e:2x2x1
jax: 0.10.0
libtpu: 0.0.40
codegen_flags: <defaults>
</compile_context>

<pallas_src>
import functools

import jax
import jax.numpy as jnp
from jax.experimental import pallas as pl
from jax.experimental.pallas import tpu as pltpu

NUM_CLASSES = 19
IGNORE_INDEX = 255
AUX_WEIGHT = 0.4
# smp.DiceLoss defaults (smooth is not overridden by the wrapper module)
DICE_SMOOTH = 0.0
DICE_EPS = 1e-7


def _round_up(x, m):
    return (x + m - 1) // m * m


def dice_psp_kernel(t_ref, x0_ref, x1_ref,
                    inter0_ref, psum0_ref, inter1_ref, psum1_ref, pres_ref,
                    *, hw, exp_in_bf16):
    """Blocks: t_ref (1,1,T) int32; x*_ref (1,C,T); accumulators (1,1,C,128) f32."""
    # Zero the per-(batch, pixel-chunk) resident accumulators at the start of
    # each reduction chain (last grid axis).
    @pl.when(pl.program_id(2) == 0)
    def _():
        inter0_ref[...] = jnp.zeros_like(inter0_ref)
        psum0_ref[...] = jnp.zeros_like(psum0_ref)
        inter1_ref[...] = jnp.zeros_like(inter1_ref)
        psum1_ref[...] = jnp.zeros_like(psum1_ref)
        pres_ref[...] = jnp.zeros_like(pres_ref)

    C = x0_ref.shape[1]
    T = x0_ref.shape[2]
    n_groups = T // 128

    def lane_group_sum(v):
        # (C, T) f32 -> (C, 128): pairwise tree of lane-aligned 128-wide static
        # slices (pure VPU adds, no relayout, no XLU rotates).
        groups = [v[:, g * 128:(g + 1) * 128] for g in range(n_groups)]
        while len(groups) > 1:
            nxt = [a + b for a, b in zip(groups[0::2], groups[1::2])]
            if len(groups) % 2:
                nxt.append(groups[-1])
            groups = nxt
        return groups[0]

    # Ragged-tail mask: global pixel index of each lane of this tile.
    tile_idx = pl.program_id(1) * pl.num_programs(2) + pl.program_id(2)
    lane = jax.lax.broadcasted_iota(jnp.int32, (1, T), 1)
    in_bounds = (lane + tile_idx * T) < hw                      # (1, T) bool

    tgt = t_ref[0]                                              # (1, T) int32
    valid = jnp.logical_and(tgt != IGNORE_INDEX, in_bounds)     # (1, T) bool

    # one-hot(target): classes on sublanes. Ignored pixels (255) match no class;
    # the in_bounds mask also kills garbage tail lanes that might alias a class.
    cls = jax.lax.broadcasted_iota(jnp.int32, (C, 1), 0)        # (C, 1)
    onehot = jnp.logical_and(cls == tgt, in_bounds).astype(jnp.float32)  # (C, T)

    # per-class one-hot count / presence (shared by both predictions)
    pres_ref[...] += lane_group_sum(onehot)[None, None]

    def accumulate(x_ref, inter_ref, psum_ref):
        x = x_ref[0].astype(jnp.float32)                        # (C, T)
        # numerically stable softmax over the class (sublane) axis
        m = jnp.max(x, axis=0, keepdims=True)                   # (1, T)
        if exp_in_bf16:
            ex = jnp.exp((x - m).astype(jnp.bfloat16)).astype(jnp.float32)
        else:
            ex = jnp.exp(x - m)                                 # (C, T)
        se = jnp.sum(ex, axis=0, keepdims=True)                 # (1, T)
        inv = pl.reciprocal(se, approx=True)                    # (1, T) EUP vrcp
        # select (not multiply) so NaN/Inf from garbage tail lanes cannot leak
        p_m = jnp.where(valid, ex * inv, 0.0)                   # masked softmax
        inter_ref[...] += lane_group_sum(p_m * onehot)[None, None]
        psum_ref[...] += lane_group_sum(p_m)[None, None]

    accumulate(x0_ref, inter0_ref, psum0_ref)
    accumulate(x1_ref, inter1_ref, psum1_ref)


def dice_loss_psp(pred, target, *, aux_weight=AUX_WEIGHT, tile_hw=8192,
                  pixel_chunks=2, exp_in_bf16=False, vmem_limit_bytes=None):
    """pred: (main, aux) tuple of (N, C, H, W) logits; target: (N, H, W) int labels."""
    pred_main, pred_aux = pred
    N, C, H, W = pred_main.shape
    assert pred_aux.shape == (N, C, H, W)
    HW = H * W

    # Native layout: (N, C, H*W) is a free, contiguous reshape of NCHW.
    # Keep the model dtype (bf16 stays bf16 in HBM); upcast happens in-kernel.
    x0 = pred_main.reshape(N, C, HW)
    x1 = pred_aux.reshape(N, C, HW)
    t = target.reshape(N, 1, HW).astype(jnp.int32)

    # Lane tile over pixels (multiple of 128). Default 8192 is safe within the
    # default scoped-VMEM limit everywhere; sweep 16384+ with vmem_limit_bytes.
    t_hw = _round_up(min(tile_hw, _round_up(HW, 128)), 128)
    num_tiles = pl.cdiv(HW, t_hw)

    # Optional second "parallel" axis over pixel chunks (fills both v7x TCs for
    # small N). Only used when it divides the tile count so every block index
    # the index_map emits is in-bounds.
    P = pixel_chunks if (pixel_chunks > 1 and num_tiles % pixel_chunks == 0) else 1
    K = num_tiles // P

    grid = (N, P, K)
    acc_shape = jax.ShapeDtypeStruct((N, P, C, 128), jnp.float32)
    acc_spec = pl.BlockSpec((1, 1, C, 128), lambda n, p, k: (n, p, 0, 0))

    kernel = functools.partial(dice_psp_kernel, hw=HW, exp_in_bf16=exp_in_bf16)

    inter0, psum0, inter1, psum1, pres = pl.pallas_call(
        kernel,
        out_shape=(acc_shape,) * 5,
        grid_spec=pltpu.PrefetchScalarGridSpec(
            num_scalar_prefetch=0,
            grid=grid,
            in_specs=[
                pl.BlockSpec((1, 1, t_hw), lambda n, p, k: (n, 0, p * K + k)),  # target
                pl.BlockSpec((1, C, t_hw), lambda n, p, k: (n, 0, p * K + k)),  # main logits
                pl.BlockSpec((1, C, t_hw), lambda n, p, k: (n, 0, p * K + k)),  # aux logits
            ],
            out_specs=[acc_spec] * 5,
        ),
        compiler_params=pltpu.CompilerParams(
            # batch & pixel-chunk axes "parallel" (per-(n,p) partial accumulators
            # -> both TCs on v7x), pixel-reduction axis "arbitrary".
            dimension_semantics=("parallel", "parallel", "arbitrary"),
            vmem_limit_bytes=vmem_limit_bytes),
    )(t, x0, x1)

    # --- tiny finalize (plain JAX): 128->1 lane reduce + sum over (N, P) ---
    pres_c = jnp.sum(pres, axis=(0, 1, 3))                      # (C,)

    def _finalize(inter, psum):
        inter_c = jnp.sum(inter, axis=(0, 1, 3))
        card_c = jnp.sum(psum, axis=(0, 1, 3)) + pres_c
        dice = (2.0 * inter_c + DICE_SMOOTH) / jnp.maximum(card_c + DICE_SMOOTH,
                                                           DICE_EPS)
        loss_c = (1.0 - dice) * (pres_c > 0).astype(jnp.float32)
        return jnp.mean(loss_c)

    main_loss = _finalize(inter0, psum0)
    aux_loss = _finalize(inter1, psum1)
    return (1.0 - aux_weight / 2.0) * main_loss + (aux_weight / 2.0) * aux_loss


# ---------------- pure-JAX reference (mirrors smp.DiceLoss multiclass) -------


def _dice_loss_ref(logits, target):
    N, C = logits.shape[0], logits.shape[1]
    x = logits.reshape(N, C, -1).astype(jnp.float32)
    t = target.reshape(N, -1).astype(jnp.int32)
    valid = (t != IGNORE_INDEX).astype(jnp.float32)               # (N, HW)
    p = jax.nn.softmax(x, axis=1) * valid[:, None, :]
    oh = jax.nn.one_hot(jnp.where(valid > 0, t, 0), C, dtype=jnp.float32)
    oh = jnp.transpose(oh, (0, 2, 1)) * valid[:, None, :]         # (N, C, HW)
    inter = jnp.sum(p * oh, axis=(0, 2))
    card = jnp.sum(p + oh, axis=(0, 2))
    dice = (2.0 * inter + DICE_SMOOTH) / jnp.maximum(card + DICE_SMOOTH, DICE_EPS)
    pres = jnp.sum(oh, axis=(0, 2))
    loss_c = (1.0 - dice) * (pres > 0).astype(jnp.float32)
    return jnp.mean(loss_c)


def _reference(pred_main, pred_aux, target, aux_weight=AUX_WEIGHT):
    return ((1.0 - aux_weight / 2.0) * _dice_loss_ref(pred_main, target)
            + (aux_weight / 2.0) * _dice_loss_ref(pred_aux, target))


def _make_inputs(key, N, C, H, W):
    k1, k2, k3, k4 = jax.random.split(key, 4)
    pred_main = jax.random.normal(k1, (N, C, H, W), dtype=jnp.float32)
    pred_aux = jax.random.normal(k2, (N, C, H, W), dtype=jnp.float32)
    labels = jax.random.randint(k3, (N, H, W), 0, C, dtype=jnp.int32)
    ignore_mask = jax.random.uniform(k4, (N, H, W)) < 0.1
    target = jnp.where(ignore_mask, IGNORE_INDEX, labels)
    return pred_main, pred_aux, target


if __name__ == "__main__":
    key = jax.random.PRNGKey(0)
    k_a, k_b, k_c = jax.random.split(key, 3)

    # 1) exact-tile shape, default tiling
    pm, pa, tg = _make_inputs(k_a, 2, NUM_CLASSES, 16, 16)
    loss = jax.block_until_ready(dice_loss_psp((pm, pa), tg))
    ref = _reference(pm, pa, tg)
    assert jnp.allclose(loss, ref, rtol=2e-3, atol=2e-3), (loss, ref)

    # 2) ragged pixel tail (HW=320, tile=128 -> 3 tiles, last one masked in-kernel)
    pm, pa, tg = _make_inputs(k_b, 2, NUM_CLASSES, 16, 20)
    loss = jax.block_until_ready(dice_loss_psp((pm, pa), tg, tile_hw=128))
    ref = _reference(pm, pa, tg)
    assert jnp.allclose(loss, ref, rtol=2e-3, atol=2e-3), (loss, ref)

    # 3) pixel-chunk parallel axis active (HW=512, tile=128 -> 4 tiles, P=2)
    pm, pa, tg = _make_inputs(k_c, 1, NUM_CLASSES, 16, 32)
    loss = jax.block_until_ready(
        dice_loss_psp((pm, pa), tg, tile_hw=128, pixel_chunks=2))
    ref = _reference(pm, pa, tg)
    assert jnp.allclose(loss, ref, rtol=2e-3, atol=2e-3), (loss, ref)

    print("KERNEL_OK")
</pallas_src>

<mosaic_0001>
module attributes {stable_mosaic.version = 11 : i64} {
  func.func @dice_psp_kernel(%arg0: i32, %arg1: i32, %arg2: i32, %arg3: memref<1x1x256xi32, #tpu.memory_space<vmem>>, %arg4: memref<1x19x256xf32, #tpu.memory_space<vmem>>, %arg5: memref<1x19x256xf32, #tpu.memory_space<vmem>>, %arg6: memref<1x1x19x128xf32, #tpu.memory_space<vmem>>, %arg7: memref<1x1x19x128xf32, #tpu.memory_space<vmem>>, %arg8: memref<1x1x19x128xf32, #tpu.memory_space<vmem>>, %arg9: memref<1x1x19x128xf32, #tpu.memory_space<vmem>>, %arg10: memref<1x1x19x128xf32, #tpu.memory_space<vmem>>) attributes {dimension_semantics = [#tpu.dimension_semantics<parallel>, #tpu.dimension_semantics<parallel>, #tpu.dimension_semantics<arbitrary>], iteration_bounds = array<i64: 2, 1, 1>, scalar_prefetch = 0 : i64, scratch_operands = 0 : i64, tpu.core_type = #tpu.core_type<tc>, window_params = [{transform_indices = @transform_0, window_bounds = array<i64: 1, 1, 256>}, {transform_indices = @transform_1, window_bounds = array<i64: 1, 19, 256>}, {transform_indices = @transform_2, window_bounds = array<i64: 1, 19, 256>}, {transform_indices = @transform_3, window_bounds = array<i64: 1, 1, 19, 128>}, {transform_indices = @transform_4, window_bounds = array<i64: 1, 1, 19, 128>}, {transform_indices = @transform_5, window_bounds = array<i64: 1, 1, 19, 128>}, {transform_indices = @transform_6, window_bounds = array<i64: 1, 1, 19, 128>}, {transform_indices = @transform_7, window_bounds = array<i64: 1, 1, 19, 128>}]} {
    %c0_i32 = arith.constant 0 : i32
    %0 = arith.cmpi eq, %arg2, %c0_i32 : i32
    %1 = arith.extui %0 : i1 to i32
    %c0_i32_0 = arith.constant 0 : i32
    %2 = arith.cmpi ne, %1, %c0_i32_0 : i32
    scf.if %2 {
      %cst_55 = arith.constant 0.000000e+00 : f32
      %93 = vector.broadcast %cst_55 : f32 to vector<1x1x19x128xf32>
      %c0_56 = arith.constant 0 : index
      %c0_57 = arith.constant 0 : index
      %c0_58 = arith.constant 0 : index
      %c0_59 = arith.constant 0 : index
      %94 = vector.load %arg6[%c0_56, %c0_57, %c0_58, %c0_59] : memref<1x1x19x128xf32, #tpu.memory_space<vmem>>, vector<1x1x19x128xf32>
      tpu.vector_store %arg6[%c0_56, %c0_57, %c0_58, %c0_59], %93 {strides = array<i32>} : memref<1x1x19x128xf32, #tpu.memory_space<vmem>>, vector<1x1x19x128xf32>,
      %cst_60 = arith.constant 0.000000e+00 : f32
      %95 = vector.broadcast %cst_60 : f32 to vector<1x1x19x128xf32>
      %c0_61 = arith.constant 0 : index
      %c0_62 = arith.constant 0 : index
      %c0_63 = arith.constant 0 : index
      %c0_64 = arith.constant 0 : index
      %96 = vector.load %arg7[%c0_61, %c0_62, %c0_63, %c0_64] : memref<1x1x19x128xf32, #tpu.memory_space<vmem>>, vector<1x1x19x128xf32>
      tpu.vector_store %arg7[%c0_61, %c0_62, %c0_63, %c0_64], %95 {strides = array<i32>} : memref<1x1x19x128xf32, #tpu.memory_space<vmem>>, vector<1x1x19x128xf32>,
      %cst_65 = arith.constant 0.000000e+00 : f32
      %97 = vector.broadcast %cst_65 : f32 to vector<1x1x19x128xf32>
      %c0_66 = arith.constant 0 : index
      %c0_67 = arith.constant 0 : index
      %c0_68 = arith.constant 0 : index
      %c0_69 = arith.constant 0 : index
      %98 = vector.load %arg8[%c0_66, %c0_67, %c0_68, %c0_69] : memref<1x1x19x128xf32, #tpu.memory_space<vmem>>, vector<1x1x19x128xf32>
      tpu.vector_store %arg8[%c0_66, %c0_67, %c0_68, %c0_69], %97 {strides = array<i32>} : memref<1x1x19x128xf32, #tpu.memory_space<vmem>>, vector<1x1x19x128xf32>,
      %cst_70 = arith.constant 0.000000e+00 : f32
      %99 = vector.broadcast %cst_70 : f32 to vector<1x1x19x128xf32>
      %c0_71 = arith.constant 0 : index
      %c0_72 = arith.constant 0 : index
      %c0_73 = arith.constant 0 : index
      %c0_74 = arith.constant 0 : index
      %100 = vector.load %arg9[%c0_71, %c0_72, %c0_73, %c0_74] : memref<1x1x19x128xf32, #tpu.memory_space<vmem>>, vector<1x1x19x128xf32>
      tpu.vector_store %arg9[%c0_71, %c0_72, %c0_73, %c0_74], %99 {strides = array<i32>} : memref<1x1x19x128xf32, #tpu.memory_space<vmem>>, vector<1x1x19x128xf32>,
      %cst_75 = arith.constant 0.000000e+00 : f32
      %101 = vector.broadcast %cst_75 : f32 to vector<1x1x19x128xf32>
      %c0_76 = arith.constant 0 : index
      %c0_77 = arith.constant 0 : index
      %c0_78 = arith.constant 0 : index
      %c0_79 = arith.constant 0 : index
      %102 = vector.load %arg10[%c0_76, %c0_77, %c0_78, %c0_79] : memref<1x1x19x128xf32, #tpu.memory_space<vmem>>, vector<1x1x19x128xf32>
      tpu.vector_store %arg10[%c0_76, %c0_77, %c0_78, %c0_79], %101 {strides = array<i32>} : memref<1x1x19x128xf32, #tpu.memory_space<vmem>>, vector<1x1x19x128xf32>,
    } else {
    }
    %c1_i32 = arith.constant 1 : i32
    %3 = arith.muli %arg1, %c1_i32 : i32
    %4 = arith.addi %3, %arg2 : i32
    %5 = tpu.iota {dimensions = array<i32: 1>} : vector<1x256xi32>
    %c256_i32 = arith.constant 256 : i32
    %6 = arith.muli %4, %c256_i32 : i32
    %7 = vector.broadcast %6 : i32 to vector<1x256xi32>
    %8 = arith.addi %5, %7 : vector<1x256xi32>
    %c256_i32_1 = arith.constant 256 : i32
    %9 = vector.broadcast %c256_i32_1 : i32 to vector<1x256xi32>
    %10 = arith.cmpi slt, %8, %9 : vector<1x256xi32>
    %c0 = arith.constant 0 : index
    %c0_2 = arith.constant 0 : index
    %c0_3 = arith.constant 0 : index
    %11 = vector.load %arg3[%c0, %c0_2, %c0_3] : memref<1x1x256xi32, #tpu.memory_space<vmem>>, vector<1x1x256xi32>
    %12 = vector.shape_cast %11 : vector<1x1x256xi32> to vector<1x256xi32>
    %c255_i32 = arith.constant 255 : i32
    %13 = vector.broadcast %c255_i32 : i32 to vector<1x256xi32>
    %14 = arith.cmpi ne, %12, %13 : vector<1x256xi32>
    %15 = arith.andi %14, %10 : vector<1x256xi1>
    %16 = tpu.iota {dimensions = array<i32: 0>} : vector<19x1xi32>
    %17 = vector.broadcast %16 : vector<19x1xi32> to vector<19x256xi32>
    %18 = vector.broadcast %12 : vector<1x256xi32> to vector<19x256xi32>
    %19 = arith.cmpi eq, %17, %18 : vector<19x256xi32>
    %20 = vector.broadcast %10 : vector<1x256xi1> to vector<19x256xi1>
    %21 = arith.andi %19, %20 : vector<19x256xi1>
    %22 = arith.extui %21 : vector<19x256xi1> to vector<19x256xi32>
    %23 = arith.sitofp %22 : vector<19x256xi32> to vector<19x256xf32>
    %c0_4 = arith.constant 0 : index
    %c0_5 = arith.constant 0 : index
    %c0_6 = arith.constant 0 : index
    %c0_7 = arith.constant 0 : index
    %24 = vector.load %arg10[%c0_4, %c0_5, %c0_6, %c0_7] : memref<1x1x19x128xf32, #tpu.memory_space<vmem>>, vector<1x1x19x128xf32>
    %25 = vector.extract_strided_slice %23 {offsets = [0, 0], sizes = [19, 128], strides = [1, 1]} : vector<19x256xf32> to vector<19x128xf32>
    %26 = vector.extract_strided_slice %23 {offsets = [0, 128], sizes = [19, 128], strides = [1, 1]} : vector<19x256xf32> to vector<19x128xf32>
    %27 = arith.addf %25, %26 : vector<19x128xf32>
    %28 = vector.shape_cast %27 : vector<19x128xf32> to vector<1x1x19x128xf32>
    %29 = arith.addf %24, %28 : vector<1x1x19x128xf32>
    %c0_8 = arith.constant 0 : index
    %c0_9 = arith.constant 0 : index
    %c0_10 = arith.constant 0 : index
    %c0_11 = arith.constant 0 : index
    %30 = vector.load %arg10[%c0_8, %c0_9, %c0_10, %c0_11] : memref<1x1x19x128xf32, #tpu.memory_space<vmem>>, vector<1x1x19x128xf32>
    tpu.vector_store %arg10[%c0_8, %c0_9, %c0_10, %c0_11], %29 {strides = array<i32>} : memref<1x1x19x128xf32, #tpu.memory_space<vmem>>, vector<1x1x19x128xf32>,
    %c0_12 = arith.constant 0 : index
    %c0_13 = arith.constant 0 : index
    %c0_14 = arith.constant 0 : index
    %31 = vector.load %arg4[%c0_12, %c0_13, %c0_14] : memref<1x19x256xf32, #tpu.memory_space<vmem>>, vector<1x19x256xf32>
    %32 = vector.shape_cast %31 : vector<1x19x256xf32> to vector<19x256xf32>
    %cst = arith.constant dense<0xFF800000> : vector<256xf32>
    %33 = vector.multi_reduction <maximumf>, %32, %cst [0] : vector<19x256xf32> to vector<256xf32>
    %34 = vector.shape_cast %33 : vector<256xf32> to vector<1x256xf32>
    %35 = vector.broadcast %34 : vector<1x256xf32> to vector<19x256xf32>
    %36 = arith.subf %32, %35 : vector<19x256xf32>
    %37 = math.exp %36 : vector<19x256xf32>
    %cst_15 = arith.constant dense<0.000000e+00> : vector<256xf32>
    %38 = vector.multi_reduction <add>, %37, %cst_15 [0] : vector<19x256xf32> to vector<256xf32>
    %39 = vector.shape_cast %38 : vector<256xf32> to vector<1x256xf32>
    %40 = tpu.reciprocal %39 {approx = true} : vector<1x256xf32> -> vector<1x256xf32>
    %41 = vector.broadcast %40 : vector<1x256xf32> to vector<19x256xf32>
    %42 = arith.mulf %37, %41 : vector<19x256xf32>
    %cst_16 = arith.constant 0.000000e+00 : f32
    %43 = vector.shape_cast %15 : vector<1x256xi1> to vector<1x256xi1>
    %44 = vector.broadcast %43 : vector<1x256xi1> to vector<19x256xi1>
    %45 = vector.broadcast %cst_16 : f32 to vector<19x256xf32>
    %46 = arith.select %44, %42, %45 : vector<19x256xi1>, vector<19x256xf32>
    %c0_17 = arith.constant 0 : index
    %c0_18 = arith.constant 0 : index
    %c0_19 = arith.constant 0 : index
    %c0_20 = arith.constant 0 : index
    %47 = vector.load %arg6[%c0_17, %c0_18, %c0_19, %c0_20] : memref<1x1x19x128xf32, #tpu.memory_space<vmem>>, vector<1x1x19x128xf32>
    %48 = arith.mulf %46, %23 : vector<19x256xf32>
    %49 = vector.extract_strided_slice %48 {offsets = [0, 0], sizes = [19, 128], strides = [1, 1]} : vector<19x256xf32> to vector<19x128xf32>
    %50 = vector.extract_strided_slice %48 {offsets = [0, 128], sizes = [19, 128], strides = [1, 1]} : vector<19x256xf32> to vector<19x128xf32>
    %51 = arith.addf %49, %50 : vector<19x128xf32>
    %52 = vector.shape_cast %51 : vector<19x128xf32> to vector<1x1x19x128xf32>
    %53 = arith.addf %47, %52 : vector<1x1x19x128xf32>
    %c0_21 = arith.constant 0 : index
    %c0_22 = arith.constant 0 : index
    %c0_23 = arith.constant 0 : index
    %c0_24 = arith.constant 0 : index
    %54 = vector.load %arg6[%c0_21, %c0_22, %c0_23, %c0_24] : memref<1x1x19x128xf32, #tpu.memory_space<vmem>>, vector<1x1x19x128xf32>
    tpu.vector_store %arg6[%c0_21, %c0_22, %c0_23, %c0_24], %53 {strides = array<i32>} : memref<1x1x19x128xf32, #tpu.memory_space<vmem>>, vector<1x1x19x128xf32>,
    %c0_25 = arith.constant 0 : index
    %c0_26 = arith.constant 0 : index
    %c0_27 = arith.constant 0 : index
    %c0_28 = arith.constant 0 : index
    %55 = vector.load %arg7[%c0_25, %c0_26, %c0_27, %c0_28] : memref<1x1x19x128xf32, #tpu.memory_space<vmem>>, vector<1x1x19x128xf32>
    %56 = vector.extract_strided_slice %46 {offsets = [0, 0], sizes = [19, 128], strides = [1, 1]} : vector<19x256xf32> to vector<19x128xf32>
    %57 = vector.extract_strided_slice %46 {offsets = [0, 128], sizes = [19, 128], strides = [1, 1]} : vector<19x256xf32> to vector<19x128xf32>
    %58 = arith.addf %56, %57 : vector<19x128xf32>
    %59 = vector.shape_cast %58 : vector<19x128xf32> to vector<1x1x19x128xf32>
    %60 = arith.addf %55, %59 : vector<1x1x19x128xf32>
    %c0_29 = arith.constant 0 : index
    %c0_30 = arith.constant 0 : index
    %c0_31 = arith.constant 0 : index
    %c0_32 = arith.constant 0 : index
    %61 = vector.load %arg7[%c0_29, %c0_30, %c0_31, %c0_32] : memref<1x1x19x128xf32, #tpu.memory_space<vmem>>, vector<1x1x19x128xf32>
    tpu.vector_store %arg7[%c0_29, %c0_30, %c0_31, %c0_32], %60 {strides = array<i32>} : memref<1x1x19x128xf32, #tpu.memory_space<vmem>>, vector<1x1x19x128xf32>,
    %c0_33 = arith.constant 0 : index
    %c0_34 = arith.constant 0 : index
    %c0_35 = arith.constant 0 : index
    %62 = vector.load %arg5[%c0_33, %c0_34, %c0_35] : memref<1x19x256xf32, #tpu.memory_space<vmem>>, vector<1x19x256xf32>
    %63 = vector.shape_cast %62 : vector<1x19x256xf32> to vector<19x256xf32>
    %cst_36 = arith.constant dense<0xFF800000> : vector<256xf32>
    %64 = vector.multi_reduction <maximumf>, %63, %cst_36 [0] : vector<19x256xf32> to vector<256xf32>
    %65 = vector.shape_cast %64 : vector<256xf32> to vector<1x256xf32>
    %66 = vector.broadcast %65 : vector<1x256xf32> to vector<19x256xf32>
    %67 = arith.subf %63, %66 : vector<19x256xf32>
    %68 = math.exp %67 : vector<19x256xf32>
    %cst_37 = arith.constant dense<0.000000e+00> : vector<256xf32>
    %69 = vector.multi_reduction <add>, %68, %cst_37 [0] : vector<19x256xf32> to vector<256xf32>
    %70 = vector.shape_cast %69 : vector<256xf32> to vector<1x256xf32>
    %71 = tpu.reciprocal %70 {approx = true} : vector<1x256xf32> -> vector<1x256xf32>
    %72 = vector.broadcast %71 : vector<1x256xf32> to vector<19x256xf32>
    %73 = arith.mulf %68, %72 : vector<19x256xf32>
    %cst_38 = arith.constant 0.000000e+00 : f32
    %74 = vector.shape_cast %15 : vector<1x256xi1> to vector<1x256xi1>
    %75 = vector.broadcast %74 : vector<1x256xi1> to vector<19x256xi1>
    %76 = vector.broadcast %cst_38 : f32 to vector<19x256xf32>
    %77 = arith.select %75, %73, %76 : vector<19x256xi1>, vector<19x256xf32>
    %c0_39 = arith.constant 0 : index
    %c0_40 = arith.constant 0 : index
    %c0_41 = arith.constant 0 : index
    %c0_42 = arith.constant 0 : index
    %78 = vector.load %arg8[%c0_39, %c0_40, %c0_41, %c0_42] : memref<1x1x19x128xf32, #tpu.memory_space<vmem>>, vector<1x1x19x128xf32>
    %79 = arith.mulf %77, %23 : vector<19x256xf32>
    %80 = vector.extract_strided_slice %79 {offsets = [0, 0], sizes = [19, 128], strides = [1, 1]} : vector<19x256xf32> to vector<19x128xf32>
    %81 = vector.extract_strided_slice %79 {offsets = [0, 128], sizes = [19, 128], strides = [1, 1]} : vector<19x256xf32> to vector<19x128xf32>
    %82 = arith.addf %80, %81 : vector<19x128xf32>
    %83 = vector.shape_cast %82 : vector<19x128xf32> to vector<1x1x19x128xf32>
    %84 = arith.addf %78, %83 : vector<1x1x19x128xf32>
    %c0_43 = arith.constant 0 : index
    %c0_44 = arith.constant 0 : index
    %c0_45 = arith.constant 0 : index
    %c0_46 = arith.constant 0 : index
    %85 = vector.load %arg8[%c0_43, %c0_44, %c0_45, %c0_46] : memref<1x1x19x128xf32, #tpu.memory_space<vmem>>, vector<1x1x19x128xf32>
    tpu.vector_store %arg8[%c0_43, %c0_44, %c0_45, %c0_46], %84 {strides = array<i32>} : memref<1x1x19x128xf32, #tpu.memory_space<vmem>>, vector<1x1x19x128xf32>,
    %c0_47 = arith.constant 0 : index
    %c0_48 = arith.constant 0 : index
    %c0_49 = arith.constant 0 : index
    %c0_50 = arith.constant 0 : index
    %86 = vector.load %arg9[%c0_47, %c0_48, %c0_49, %c0_50] : memref<1x1x19x128xf32, #tpu.memory_space<vmem>>, vector<1x1x19x128xf32>
    %87 = vector.extract_strided_slice %77 {offsets = [0, 0], sizes = [19, 128], strides = [1, 1]} : vector<19x256xf32> to vector<19x128xf32>
    %88 = vector.extract_strided_slice %77 {offsets = [0, 128], sizes = [19, 128], strides = [1, 1]} : vector<19x256xf32> to vector<19x128xf32>
    %89 = arith.addf %87, %88 : vector<19x128xf32>
    %90 = vector.shape_cast %89 : vector<19x128xf32> to vector<1x1x19x128xf32>
    %91 = arith.addf %86, %90 : vector<1x1x19x128xf32>
    %c0_51 = arith.constant 0 : index
    %c0_52 = arith.constant 0 : index
    %c0_53 = arith.constant 0 : index
    %c0_54 = arith.constant 0 : index
    %92 = vector.load %arg9[%c0_51, %c0_52, %c0_53, %c0_54] : memref<1x1x19x128xf32, #tpu.memory_space<vmem>>, vector<1x1x19x128xf32>
    tpu.vector_store %arg9[%c0_51, %c0_52, %c0_53, %c0_54], %91 {strides = array<i32>} : memref<1x1x19x128xf32, #tpu.memory_space<vmem>>, vector<1x1x19x128xf32>,
    return
  }
  func.func @transform_0(%arg0: i32, %arg1: i32, %arg2: i32) -> (i32, i32, i32) {
    %c1_i32 = arith.constant 1 : i32
    %0 = arith.muli %arg1, %c1_i32 : i32
    %1 = arith.addi %0, %arg2 : i32
    %c0_i32 = arith.constant 0 : i32
    %c0_i32_0 = arith.constant 0 : i32
    return %arg0, %c0_i32, %1 : i32, i32, i32
  }
  func.func @transform_1(%arg0: i32, %arg1: i32, %arg2: i32) -> (i32, i32, i32) {
    %c1_i32 = arith.constant 1 : i32
    %0 = arith.muli %arg1, %c1_i32 : i32
    %1 = arith.addi %0, %arg2 : i32
    %c0_i32 = arith.constant 0 : i32
    %c0_i32_0 = arith.constant 0 : i32
    return %arg0, %c0_i32, %1 : i32, i32, i32
  }
  func.func @transform_2(%arg0: i32, %arg1: i32, %arg2: i32) -> (i32, i32, i32) {
    %c1_i32 = arith.constant 1 : i32
    %0 = arith.muli %arg1, %c1_i32 : i32
    %1 = arith.addi %0, %arg2 : i32
    %c0_i32 = arith.constant 0 : i32
    %c0_i32_0 = arith.constant 0 : i32
    return %arg0, %c0_i32, %1 : i32, i32, i32
  }
  func.func @transform_3(%arg0: i32, %arg1: i32, %arg2: i32) -> (i32, i32, i32, i32) {
    %c0_i32 = arith.constant 0 : i32
    %c0_i32_0 = arith.constant 0 : i32
    %c0_i32_1 = arith.constant 0 : i32
    return %arg0, %arg1, %c0_i32, %c0_i32_0 : i32, i32, i32, i32
  }
  func.func @transform_4(%arg0: i32, %arg1: i32, %arg2: i32) -> (i32, i32, i32, i32) {
    %c0_i32 = arith.constant 0 : i32
    %c0_i32_0 = arith.constant 0 : i32
    %c0_i32_1 = arith.constant 0 : i32
    return %arg0, %arg1, %c0_i32, %c0_i32_0 : i32, i32, i32, i32
  }
  func.func @transform_5(%arg0: i32, %arg1: i32, %arg2: i32) -> (i32, i32, i32, i32) {
    %c0_i32 = arith.constant 0 : i32
    %c0_i32_0 = arith.constant 0 : i32
    %c0_i32_1 = arith.constant 0 : i32
    return %arg0, %arg1, %c0_i32, %c0_i32_0 : i32, i32, i32, i32
  }
  func.func @transform_6(%arg0: i32, %arg1: i32, %arg2: i32) -> (i32, i32, i32, i32) {
    %c0_i32 = arith.constant 0 : i32
    %c0_i32_0 = arith.constant 0 : i32
    %c0_i32_1 = arith.constant 0 : i32
    return %arg0, %arg1, %c0_i32, %c0_i32_0 : i32, i32, i32, i32
  }
  func.func @transform_7(%arg0: i32, %arg1: i32, %arg2: i32) -> (i32, i32, i32, i32) {
    %c0_i32 = arith.constant 0 : i32
    %c0_i32_0 = arith.constant 0 : i32
    %c0_i32_1 = arith.constant 0 : i32
    return %arg0, %arg1, %c0_i32, %c0_i32_0 : i32, i32, i32, i32
  }
}

</mosaic_0001>

<llo_original>
// kernel: tpu_custom_call.1
$region0: #{tpu_custom_call.1}
  #allocation0 [shape = 'u32[]', space=smem, size = 0x4, offset = 0x4, fixed_abs, tag = 'smem constant byte address 0x4 - core index']
  #allocation1 [shape = 'u32[144,128]{1,0:T(1,128)}', space=vmem, size = 0x12000, scoped, tag = 'internal scratch']
  %s0 = inlined_call_operand.vmem [shape: s32[2,1,256], index: 0, kind: input, shape index: {}]
  %s1 = inlined_call_operand.vmem [shape: f32[2,19,256], index: 1, kind: input, shape index: {}]
  %s2 = inlined_call_operand.vmem [shape: f32[2,19,256], index: 2, kind: input, shape index: {}]
  %s3 = inlined_call_operand.vmem [shape: f32[2,1,19,128], index: 3, kind: output, shape index: {0}]
  %s4 = inlined_call_operand.vmem [shape: f32[2,1,19,128], index: 4, kind: output, shape index: {1}]
  %s5 = inlined_call_operand.vmem [shape: f32[2,1,19,128], index: 5, kind: output, shape index: {2}]
  %s6 = inlined_call_operand.vmem [shape: f32[2,1,19,128], index: 6, kind: output, shape index: {3}]
  %s7 = inlined_call_operand.vmem [shape: f32[2,1,19,128], index: 7, kind: output, shape index: {4}]
  %8 = xla_tuple %s3, %s4, %s5, %s6, %s7
  %s9 = sld [smem:[#allocation0]]
  $region81: #{tpu_custom_call.1} parent=0
    _
  %s11 = ssub.s32 1, %s9
  %s12 = scalar_select 0, %s11, %s9
  loop: start=0, step=1, limit=4
  $region2: #{tpu_custom_call.1} parent=0 // loop_pre_header
    _
  $region3: #{tpu_custom_call.1} parent=0 // loop_header
    %s14 = sphi 0, %s18
    %p15 = scmp.ge.s32.totalorder %s14, 4
    %s21 = sphi 0, %s40
    %s22 = sphi 0, %s36
    %s23 = sphi 0, %s32
    %s24 = sphi 0, %s21
    %s25 = sphi 0, %s22
    %s26 = sphi 0, %s23
    %s27 = sphi 0, %s24
    %s28 = sphi 0, %s25
    %s29 = sphi 0, %s26
    %s47 = sphi 0, %s49
    %s50 = sphi 0, %s47
    %s51 = sphi 0, %s50
    %s67 = sphi 0, %s51
    %s77 = sphi 0, %s79
    %s80 = sphi 0, %s77
    %s81 = sphi 0, %s80
    %s97 = sphi 0, %s81
    %s107 = sphi 0, %s109
    %s110 = sphi 0, %s107
    %s111 = sphi 0, %s110
    %s127 = sphi 0, %s111
    %s135 = sphi 0, %s137
    %s138 = sphi 0, %s135
    %s139 = sphi 0, %s138
    %s155 = sphi 0, %s139
    %s163 = sphi 0, %s165
    %s166 = sphi 0, %s163
    %s167 = sphi 0, %s166
    %s183 = sphi 0, %s167
    %s191 = sphi 0, %s193
    %s194 = sphi 0, %s191
    %s195 = sphi 0, %s194
    %s211 = sphi 0, %s195
    %s219 = sphi 0, %s221
    %s222 = sphi 0, %s219
    %s223 = sphi 0, %s222
    %s239 = sphi 0, %s223
    %s247 = sphi 0, %s249
    %s250 = sphi 0, %s247
    %s251 = sphi 0, %s250
    %s267 = sphi 0, %s251
  $region4: #{tpu_custom_call.1} parent=0 // loop_header_branch
    %17 = sbr.rel (%p15) target = $region8
  $region5: #{tpu_custom_call.1} parent=0 // loop_body
    %s19 = ssub.s32 %s14, 1
    %s20 = ssub.s32 %s14, 2
    %s30 = sadd.s32 1, %s23
    %p31 = scmp.ge.s32.totalorder %s30, 1
    %s32 = scalar_select %p31, 0, %s30
    %s33 = sadd.s32 1, %s22
    %s34 = scalar_select %p31, %s33, %s22
    %p35 = scmp.ge.s32.totalorder %s34, 1
    %s36 = scalar_select %p35, 0, %s34
    %s37 = sadd.s32 1, %s21
    %s38 = scalar_select %p35, %s37, %s21
    %p39 = scmp.ge.s32.totalorder %s38, 2
    %s40 = scalar_select %p39, 0, %s38
    %s41 = sadd.s32 %s22, %s23
    %s42 = sadd.s32 %s36, %s32
    %s43 = ssub.s32 %s21, %s40
    %s44 = ssub.s32 %s41, %s42
    %s45 = sor.u32 %s43, %s44
    %p46 = scmp.eq.s32.totalorder %s45, 0
    %s48 = sadd.s32 %s47, 1
    %s49 = scalar_select %p46, %s47, %s48
    %p52 = pneg %p46
    %p53 = scmp.eq.s32.totalorder %s14, 1
    %p54 = por %p52, %p53
    %p55 = scmp.ne.s32.totalorder %s47, %s50
    %p56 = scmp.eq.s32.totalorder %s14, 0
    %p57 = por %p55, %p56
    %p58 = scmp.ne.s32.totalorder %s47, %s50
    %p59 = scmp.eq.s32.totalorder %s19, 1
    %p60 = por %p58, %p59
    %p61 = scmp.ne.s32.totalorder %s50, %s51
    %p62 = scmp.eq.s32.totalorder %s19, 0
    %p63 = por %p61, %p62
    %p64 = scmp.ne.s32.totalorder %s50, %s51
    %p65 = scmp.eq.s32.totalorder %s20, 1
    %p66 = por %p64, %p65
    %p68 = scmp.ne.s32.totalorder %s51, %s67
    %p69 = scmp.eq.s32.totalorder %s20, 0
    %p70 = por %p68, %p69
    %s71 = sadd.s32 %s22, %s23
    %s72 = sadd.s32 %s36, %s32
    %s73 = ssub.s32 %s21, %s40
    %s74 = ssub.s32 %s71, %s72
    %s75 = sor.u32 %s73, %s74
    %p76 = scmp.eq.s32.totalorder %s75, 0
    %s78 = sadd.s32 %s77, 1
    %s79 = scalar_select %p76, %s77, %s78
    %p82 = pneg %p76
    %p83 = scmp.eq.s32.totalorder %s14, 1
    %p84 = por %p82, %p83
    %p85 = scmp.ne.s32.totalorder %s77, %s80
    %p86 = scmp.eq.s32.totalorder %s14, 0
    %p87 = por %p85, %p86
    %p88 = scmp.ne.s32.totalorder %s77, %s80
    %p89 = scmp.eq.s32.totalorder %s19, 1
    %p90 = por %p88, %p89
    %p91 = scmp.ne.s32.totalorder %s80, %s81
    %p92 = scmp.eq.s32.totalorder %s19, 0
    %p93 = por %p91, %p92
    %p94 = scmp.ne.s32.totalorder %s80, %s81
    %p95 = scmp.eq.s32.totalorder %s20, 1
    %p96 = por %p94, %p95
    %p98 = scmp.ne.s32.totalorder %s81, %s97
    %p99 = scmp.eq.s32.totalorder %s20, 0
    %p100 = por %p98, %p99
    %s101 = sadd.s32 %s22, %s23
    %s102 = sadd.s32 %s36, %s32
    %s103 = ssub.s32 %s21, %s40
    %s104 = ssub.s32 %s101, %s102
    %s105 = sor.u32 %s103, %s104
    %p106 = scmp.eq.s32.totalorder %s105, 0
    %s108 = sadd.s32 %s107, 1
    %s109 = scalar_select %p106, %s107, %s108
    %p112 = pneg %p106
    %p113 = scmp.eq.s32.totalorder %s14, 1
    %p114 = por %p112, %p113
    %p115 = scmp.ne.s32.totalorder %s107, %s110
    %p116 = scmp.eq.s32.totalorder %s14, 0
    %p117 = por %p115, %p116
    %p118 = scmp.ne.s32.totalorder %s107, %s110
    %p119 = scmp.eq.s32.totalorder %s19, 1
    %p120 = por %p118, %p119
    %p121 = scmp.ne.s32.totalorder %s110, %s111
    %p122 = scmp.eq.s32.totalorder %s19, 0
    %p123 = por %p121, %p122
    %p124 = scmp.ne.s32.totalorder %s110, %s111
    %p125 = scmp.eq.s32.totalorder %s20, 1
    %p126 = por %p124, %p125
    %p128 = scmp.ne.s32.totalorder %s111, %s127
    %p129 = scmp.eq.s32.totalorder %s20, 0
    %p130 = por %p128, %p129
    %s131 = ssub.s32 %s21, %s40
    %s132 = ssub.s32 %s22, %s36
    %s133 = sor.u32 %s131, %s132
    %p134 = scmp.eq.s32.totalorder %s133, 0
    %s136 = sadd.s32 %s135, 1
    %s137 = scalar_select %p134, %s135, %s136
    %p140 = pneg %p134
    %p141 = scmp.eq.s32.totalorder %s14, 1
    %p142 = por %p140, %p141
    %p143 = scmp.ne.s32.totalorder %s135, %s138
    %p144 = scmp.eq.s32.totalorder %s14, 0
    %p145 = por %p143, %p144
    %p146 = scmp.ne.s32.totalorder %s135, %s138
    %p147 = scmp.eq.s32.totalorder %s19, 1
    %p148 = por %p146, %p147
    %p149 = scmp.ne.s32.totalorder %s138, %s139
    %p150 = scmp.eq.s32.totalorder %s19, 0
    %p151 = por %p149, %p150
    %p152 = scmp.ne.s32.totalorder %s138, %s139
    %p153 = scmp.eq.s32.totalorder %s20, 1
    %p154 = por %p152, %p153
    %p156 = scmp.ne.s32.totalorder %s139, %s155
    %p157 = scmp.eq.s32.totalorder %s20, 0
    %p158 = por %p156, %p157
    %s159 = ssub.s32 %s21, %s40
    %s160 = ssub.s32 %s22, %s36
    %s161 = sor.u32 %s159, %s160
    %p162 = scmp.eq.s32.totalorder %s161, 0
    %s164 = sadd.s32 %s163, 1
    %s165 = scalar_select %p162, %s163, %s164
    %p168 = pneg %p162
    %p169 = scmp.eq.s32.totalorder %s14, 1
    %p170 = por %p168, %p169
    %p171 = scmp.ne.s32.totalorder %s163, %s166
    %p172 = scmp.eq.s32.totalorder %s14, 0
    %p173 = por %p171, %p172
    %p174 = scmp.ne.s32.totalorder %s163, %s166
    %p175 = scmp.eq.s32.totalorder %s19, 1
    %p176 = por %p174, %p175
    %p177 = scmp.ne.s32.totalorder %s166, %s167
    %p178 = scmp.eq.s32.totalorder %s19, 0
    %p179 = por %p177, %p178
    %p180 = scmp.ne.s32.totalorder %s166, %s167
    %p181 = scmp.eq.s32.totalorder %s20, 1
    %p182 = por %p180, %p181
    %p184 = scmp.ne.s32.totalorder %s167, %s183
    %p185 = scmp.eq.s32.totalorder %s20, 0
    %p186 = por %p184, %p185
    %s187 = ssub.s32 %s21, %s40
    %s188 = ssub.s32 %s22, %s36
    %s189 = sor.u32 %s187, %s188
    %p190 = scmp.eq.s32.totalorder %s189, 0
    %s192 = sadd.s32 %s191, 1
    %s193 = scalar_select %p190, %s191, %s192
    %p196 = pneg %p190
    %p197 = scmp.eq.s32.totalorder %s14, 1
    %p198 = por %p196, %p197
    %p199 = scmp.ne.s32.totalorder %s191, %s194
    %p200 = scmp.eq.s32.totalorder %s14, 0
    %p201 = por %p199, %p200
    %p202 = scmp.ne.s32.totalorder %s191, %s194
    %p203 = scmp.eq.s32.totalorder %s19, 1
    %p204 = por %p202, %p203
    %p205 = scmp.ne.s32.totalorder %s194, %s195
    %p206 = scmp.eq.s32.totalorder %s19, 0
    %p207 = por %p205, %p206
    %p208 = scmp.ne.s32.totalorder %s194, %s195
    %p209 = scmp.eq.s32.totalorder %s20, 1
    %p210 = por %p208, %p209
    %p212 = scmp.ne.s32.totalorder %s195, %s211
    %p213 = scmp.eq.s32.totalorder %s20, 0
    %p214 = por %p212, %p213
    %s215 = ssub.s32 %s21, %s40
    %s216 = ssub.s32 %s22, %s36
    %s217 = sor.u32 %s215, %s216
    %p218 = scmp.eq.s32.totalorder %s217, 0
    %s220 = sadd.s32 %s219, 1
    %s221 = scalar_select %p218, %s219, %s220
    %p224 = pneg %p218
    %p225 = scmp.eq.s32.totalorder %s14, 1
    %p226 = por %p224, %p225
    %p227 = scmp.ne.s32.totalorder %s219, %s222
    %p228 = scmp.eq.s32.totalorder %s14, 0
    %p229 = por %p227, %p228
    %p230 = scmp.ne.s32.totalorder %s219, %s222
    %p231 = scmp.eq.s32.totalorder %s19, 1
    %p232 = por %p230, %p231
    %p233 = scmp.ne.s32.totalorder %s222, %s223
    %p234 = scmp.eq.s32.totalorder %s19, 0
    %p235 = por %p233, %p234
    %p236 = scmp.ne.s32.totalorder %s222, %s223
    %p237 = scmp.eq.s32.totalorder %s20, 1
    %p238 = por %p236, %p237
    %p240 = scmp.ne.s32.totalorder %s223, %s239
    %p241 = scmp.eq.s32.totalorder %s20, 0
    %p242 = por %p240, %p241
    %s243 = ssub.s32 %s21, %s40
    %s244 = ssub.s32 %s22, %s36
    %s245 = sor.u32 %s243, %s244
    %p246 = scmp.eq.s32.totalorder %s245, 0
    %s248 = sadd.s32 %s247, 1
    %s249 = scalar_select %p246, %s247, %s248
    %p252 = pneg %p246
    %p253 = scmp.eq.s32.totalorder %s14, 1
    %p254 = por %p252, %p253
    %p255 = scmp.ne.s32.totalorder %s247, %s250
    %p256 = scmp.eq.s32.totalorder %s14, 0
    %p257 = por %p255, %p256
    %p258 = scmp.ne.s32.totalorder %s247, %s250
    %p259 = scmp.eq.s32.totalorder %s19, 1
    %p260 = por %p258, %p259
    %p261 = scmp.ne.s32.totalorder %s250, %s251
    %p262 = scmp.eq.s32.totalorder %s19, 0
    %p263 = por %p261, %p262
    %p264 = scmp.ne.s32.totalorder %s250, %s251
    %p265 = scmp.eq.s32.totalorder %s20, 1
    %p266 = por %p264, %p265
    %p268 = scmp.ne.s32.totalorder %s251, %s267
    %p269 = scmp.eq.s32.totalorder %s20, 0
    %p270 = por %p268, %p269
    %p271 = scmp.le.s32.totalorder 1, %s14
    %p272 = scmp.lt.s32.totalorder %s14, 3
    %p273 = pnand %p271, %p272
    %p274 = pneg %p273
    // Predicated region
    $region9: #{tpu_custom_call.1} parent=5 // pred_check
      _
    $region10: #{tpu_custom_call.1} parent=5 // pred_check_branch
      %276 = sbr.rel (%p273) target = $region12
    $region11: #{tpu_custom_call.1} parent=5 // pred_region
      %s277 = ssub.s32 %s14, 1
    $region12: #{tpu_custom_call.1} parent=5 // pred_fallthru
      _
    %p278 = scmp.lt.s32.totalorder %s14, 2
    // Predicated region
    $region13: #{tpu_custom_call.1} parent=5 // pred_check
      %p279 = pneg %p278
    $region14: #{tpu_custom_call.1} parent=5 // pred_check_branch
      %281 = sbr.rel (%p279) target = $region16
    $region15: #{tpu_custom_call.1} parent=5 // pred_region
      // Predicated region
      $region17: #{tpu_custom_call.1} parent=15 // pred_check
        %p282 = pneg %p57
      $region18: #{tpu_custom_call.1} parent=15 // pred_check_branch
        %284 = sbr.rel (%p282) target = $region20
      $region19: #{tpu_custom_call.1} parent=15 // pred_region
        %s285 = sadd.s32 %s22, %s23
        %s286 = smul.u32 2, %s285
        %p287 = scmp.lt.s32.totalorder %s21, 1
        %s288 = scalar_select %p287, %s21, 1
        %p289 = scmp.lt.s32.totalorder %s286, 1
        %s290 = scalar_select %p289, %s286, 1
        %s291 = smul.addr %s288, 2
        %s292 = sadd.s32 %s290, %s291
        %s293 = scalar_lea.vmem %s0, %s292
        %s294 = sadd.s32 %s22, %s23
        %s295 = smul.u32 2, %s294
      $region20: #{tpu_custom_call.1} parent=15 // pred_fallthru
        _
      // Predicated region
      $region21: #{tpu_custom_call.1} parent=15 // pred_check
        %p296 = pneg %p87
      $region22: #{tpu_custom_call.1} parent=15 // pred_check_branch
        %298 = sbr.rel (%p296) target = $region24
      $region23: #{tpu_custom_call.1} parent=15 // pred_region
        %s299 = sadd.s32 %s22, %s23
        %s300 = smul.u32 2, %s299
        %p301 = scmp.lt.s32.totalorder %s21, 1
        %s302 = scalar_select %p301, %s21, 1
        %p303 = scmp.lt.s32.totalorder %s300, 1
        %s304 = scalar_select %p303, %s300, 1
        %s305 = smul.addr %s302, 6
        %s306 = sadd.s32 %s304, %s305
        %s307 = smul.addr %s306, 8
        %s308 = scalar_lea.vmem %s1, %s307
        %s309 = sadd.s32 %s22, %s23
        %s310 = smul.u32 2, %s309
      $region24: #{tpu_custom_call.1} parent=15 // pred_fallthru
        _
      // Predicated region
      $region25: #{tpu_custom_call.1} parent=15 // pred_check
        %p311 = pneg %p117
      $region26: #{tpu_custom_call.1} parent=15 // pred_check_branch
        %313 = sbr.rel (%p311) target = $region28
      $region27: #{tpu_custom_call.1} parent=15 // pred_region
        %s314 = sadd.s32 %s22, %s23
        %s315 = smul.u32 2, %s314
        %p316 = scmp.lt.s32.totalorder %s21, 1
        %s317 = scalar_select %p316, %s21, 1
        %p318 = scmp.lt.s32.totalorder %s315, 1
        %s319 = scalar_select %p318, %s315, 1
        %s320 = smul.addr %s317, 6
        %s321 = sadd.s32 %s319, %s320
        %s322 = smul.addr %s321, 8
        %s323 = scalar_lea.vmem %s2, %s322
        %s324 = sadd.s32 %s22, %s23
        %s325 = smul.u32 2, %s324
      $region28: #{tpu_custom_call.1} parent=15 // pred_fallthru
        _
    $region16: #{tpu_custom_call.1} parent=5 // pred_fallthru
      _
    %p326 = scmp.le.s32.totalorder 1, %s14
    %p327 = scmp.lt.s32.totalorder %s14, 3
    %p328 = pnand %p326, %p327
    %p329 = pneg %p328
    // Predicated region
    $region29: #{tpu_custom_call.1} parent=5 // pred_check
      _
    $region30: #{tpu_custom_call.1} parent=5 // pred_check_branch
      %331 = sbr.rel (%p328) target = $region32
    $region31: #{tpu_custom_call.1} parent=5 // pred_region
      %s332 = ssub.s32 %s14, 1
      %s333 = sadd.s32 %s25, %s26
      %s334 = smul.u32 2, %s333
      %p335 = scmp.lt.s32.totalorder %s24, 1
      %s336 = scalar_select %p335, %s24, 1
      %p337 = scmp.lt.s32.totalorder %s334, 1
      %s338 = scalar_select %p337, %s334, 1
      %s339 = smul.addr %s336, 2
      %s340 = sadd.s32 %s338, %s339
      %s341 = scalar_lea.vmem %s0, %s340
      %p342 = pneg %p63
      %p343 = pneg %p60
      %s344 = sadd.s32 %s25, %s26
      %s345 = smul.u32 2, %s344
      %p346 = scmp.lt.s32.totalorder %s24, 1
      %s347 = scalar_select %p346, %s24, 1
      %p348 = scmp.lt.s32.totalorder %s345, 1
      %s349 = scalar_select %p348, %s345, 1
      %s350 = smul.addr %s347, 6
      %s351 = sadd.s32 %s349, %s350
      %s352 = smul.addr %s351, 8
      %s353 = scalar_lea.vmem %s1, %s352
      %p354 = pneg %p93
      %p355 = pneg %p90
      %s356 = sadd.s32 %s25, %s26
      %s357 = smul.u32 2, %s356
      %p358 = scmp.lt.s32.totalorder %s24, 1
      %s359 = scalar_select %p358, %s24, 1
      %p360 = scmp.lt.s32.totalorder %s357, 1
      %s361 = scalar_select %p360, %s357, 1
      %s362 = smul.addr %s359, 6
      %s363 = sadd.s32 %s361, %s362
      %s364 = smul.addr %s363, 8
      %s365 = scalar_lea.vmem %s2, %s364
      %p366 = pneg %p123
      %p367 = pneg %p120
      %p368 = pneg %p151
      %p369 = pneg %p148
      %p370 = scmp.lt.s32.totalorder %s24, 1
      %s371 = scalar_select %p370, %s24, 1
      %p372 = scmp.lt.s32.totalorder %s25, 0
      %s373 = scalar_select %p372, %s25, 0
      %s374 = smul.addr %s373, 3
      %s375 = smul.addr %s371, 3
      %s376 = sadd.s32 %s374, %s375
      %s377 = smul.addr %s376, 8
      %s378 = scalar_lea.vmem %s3, %s377
      %p379 = pneg %p179
      %p380 = pneg %p176
      %p381 = scmp.lt.s32.totalorder %s24, 1
      %s382 = scalar_select %p381, %s24, 1
      %p383 = scmp.lt.s32.totalorder %s25, 0
      %s384 = scalar_select %p383, %s25, 0
      %s385 = smul.addr %s384, 3
      %s386 = smul.addr %s382, 3
      %s387 = sadd.s32 %s385, %s386
      %s388 = smul.addr %s387, 8
      %s389 = scalar_lea.vmem %s4, %s388
      %p390 = pneg %p207
      %p391 = pneg %p204
      %p392 = scmp.lt.s32.totalorder %s24, 1
      %s393 = scalar_select %p392, %s24, 1
      %p394 = scmp.lt.s32.totalorder %s25, 0
      %s395 = scalar_select %p394, %s25, 0
      %s396 = smul.addr %s395, 3
      %s397 = smul.addr %s393, 3
      %s398 = sadd.s32 %s396, %s397
      %s399 = smul.addr %s398, 8
      %s400 = scalar_lea.vmem %s5, %s399
      %p401 = pneg %p235
      %p402 = pneg %p232
      %p403 = scmp.lt.s32.totalorder %s24, 1
      %s404 = scalar_select %p403, %s24, 1
      %p405 = scmp.lt.s32.totalorder %s25, 0
      %s406 = scalar_select %p405, %s25, 0
      %s407 = smul.addr %s406, 3
      %s408 = smul.addr %s404, 3
      %s409 = sadd.s32 %s407, %s408
      %s410 = smul.addr %s409, 8
      %s411 = scalar_lea.vmem %s6, %s410
      %p412 = pneg %p263
      %p413 = pneg %p260
      %p414 = scmp.lt.s32.totalorder %s24, 1
      %s415 = scalar_select %p414, %s24, 1
      %p416 = scmp.lt.s32.totalorder %s25, 0
      %s417 = scalar_select %p416, %s25, 0
      %s418 = smul.addr %s417, 3
      %s419 = smul.addr %s415, 3
      %s420 = sadd.s32 %s418, %s419
      %s421 = smul.addr %s420, 8
      %s422 = scalar_lea.vmem %s7, %s421
      %s423 = sadd.s32 %s25, %s26
      %s424 = smul.u32 2, %s423
      %p425 = scmp.lt.s32.totalorder %s24, 1
      %s426 = scalar_select %p425, %s24, 1
      %p427 = scmp.lt.s32.totalorder %s424, 1
      %s428 = scalar_select %p427, %s424, 1
      %s429 = smul.addr %s426, 2
      %s430 = sadd.s32 %s428, %s429
      %s431 = scalar_lea.vmem %s0, %s430
      %s432 = sadd.s32 %s25, %s26
      %s433 = smul.u32 2, %s432
      %s434 = sadd.s32 %s25, %s26
      %s435 = smul.u32 2, %s434
      %p436 = scmp.lt.s32.totalorder %s24, 1
      %s437 = scalar_select %p436, %s24, 1
      %p438 = scmp.lt.s32.totalorder %s435, 1
      %s439 = scalar_select %p438, %s435, 1
      %s440 = smul.addr %s437, 6
      %s441 = sadd.s32 %s439, %s440
      %s442 = smul.addr %s441, 8
      %s443 = scalar_lea.vmem %s1, %s442
      %s444 = sadd.s32 %s25, %s26
      %s445 = smul.u32 2, %s444
      %s446 = sadd.s32 %s25, %s26
      %s447 = smul.u32 2, %s446
      %p448 = scmp.lt.s32.totalorder %s24, 1
      %s449 = scalar_select %p448, %s24, 1
      %p450 = scmp.lt.s32.totalorder %s447, 1
      %s451 = scalar_select %p450, %s447, 1
      %s452 = smul.addr %s449, 6
      %s453 = sadd.s32 %s451, %s452
      %s454 = smul.addr %s453, 8
      %s455 = scalar_lea.vmem %s2, %s454
      %s456 = sadd.s32 %s25, %s26
      %s457 = smul.u32 2, %s456
      %p458 = scmp.lt.s32.totalorder %s24, 1
      %s459 = scalar_select %p458, %s24, 1
      %p460 = scmp.lt.s32.totalorder %s25, 0
      %s461 = scalar_select %p460, %s25, 0
      %s462 = smul.addr %s461, 3
      %s463 = smul.addr %s459, 3
      %s464 = sadd.s32 %s462, %s463
      %s465 = smul.addr %s464, 8
      %s466 = scalar_lea.vmem %s3, %s465
      %p467 = scmp.lt.s32.totalorder %s24, 1
      %s468 = scalar_select %p467, %s24, 1
      %p469 = scmp.lt.s32.totalorder %s25, 0
      %s470 = scalar_select %p469, %s25, 0
      %s471 = smul.addr %s470, 3
      %s472 = smul.addr %s468, 3
      %s473 = sadd.s32 %s471, %s472
      %s474 = smul.addr %s473, 8
      %s475 = scalar_lea.vmem %s4, %s474
      %p476 = scmp.lt.s32.totalorder %s24, 1
      %s477 = scalar_select %p476, %s24, 1
      %p478 = scmp.lt.s32.totalorder %s25, 0
      %s479 = scalar_select %p478, %s25, 0
      %s480 = smul.addr %s479, 3
      %s481 = smul.addr %s477, 3
      %s482 = sadd.s32 %s480, %s481
      %s483 = smul.addr %s482, 8
      %s484 = scalar_lea.vmem %s5, %s483
      %p485 = scmp.lt.s32.totalorder %s24, 1
      %s486 = scalar_select %p485, %s24, 1
      %p487 = scmp.lt.s32.totalorder %s25, 0
      %s488 = scalar_select %p487, %s25, 0
      %s489 = smul.addr %s488, 3
      %s490 = smul.addr %s486, 3
      %s491 = sadd.s32 %s489, %s490
      %s492 = smul.addr %s491, 8
      %s493 = scalar_lea.vmem %s6, %s492
      %p494 = scmp.lt.s32.totalorder %s24, 1
      %s495 = scalar_select %p494, %s24, 1
      %p496 = scmp.lt.s32.totalorder %s25, 0
      %s497 = scalar_select %p496, %s25, 0
      %s498 = smul.addr %s497, 3
      %s499 = smul.addr %s495, 3
      %s500 = sadd.s32 %s498, %s499
      %s501 = smul.addr %s500, 8
      %s502 = scalar_lea.vmem %s7, %s501
      %p503 = scmp.eq.s32.totalorder %s26, 0
      // Predicated region
      $region33: #{tpu_custom_call.1} parent=31 // pred_check
        %p504 = pneg %p503
      $region34: #{tpu_custom_call.1} parent=31 // pred_check_branch
        %506 = sbr.rel (%p504) target = $region36
      $region35: #{tpu_custom_call.1} parent=31 // pred_region
        %507 = vst [vmem:[%s466] sm:$0xff] 0.0
        %508 = vst [vmem:[%s466 + $0x8] sm:$0xff] 0.0
        %509 = vst [vmem:[%s466 + $0x10] sm:$0x7] 0.0
        %510 = vst [vmem:[%s475] sm:$0xff] 0.0
        %511 = vst [vmem:[%s475 + $0x8] sm:$0xff] 0.0
        %512 = vst [vmem:[%s475 + $0x10] sm:$0x7] 0.0
        %513 = vst [vmem:[%s484] sm:$0xff] 0.0
        %514 = vst [vmem:[%s484 + $0x8] sm:$0xff] 0.0
        %515 = vst [vmem:[%s484 + $0x10] sm:$0x7] 0.0
        %516 = vst [vmem:[%s493] sm:$0xff] 0.0
        %517 = vst [vmem:[%s493 + $0x8] sm:$0xff] 0.0
        %518 = vst [vmem:[%s493 + $0x10] sm:$0x7] 0.0
        %519 = vst [vmem:[%s502] sm:$0xff] 0.0
        %520 = vst [vmem:[%s502 + $0x8] sm:$0xff] 0.0
        %521 = vst [vmem:[%s502 + $0x10] sm:$0x7] 0.0
      $region36: #{tpu_custom_call.1} parent=31 // pred_fallthru
        _
      %s522 = sadd.s32 %s25, %s26
      %v523 = vlaneseq
      %v524 = vand.u32 %v523, 127
      %v525 = vadd.s32 %v524, 128
      %s526 = smul.u32 %s522, 256
      %v527 = vstv %s526
      %v528 = vadd.s32 %v524, %v527
      %v529 = vadd.s32 %v525, %v527
      %vm530 = vcmp.lt.s32.totalorder %v528, 256
      %vm531 = vcmp.lt.s32.totalorder %v529, 256
      %v532 = vld [vmem:[%s431] sm:$0x3]
      %vm533 = vcmp.ne.s32.totalorder %v532, 255
      %v534 = vsel %vm530, 1, 0
      %v535 = vsel %vm531, 1, 0
      %v536 = vcombine.low %v534, %v535
      %v538 = vunpack.c.l.s4 1966171168
      %v539 = vunpack.c.0.s8 %v538
      %v540 = vlaneseq
      %v541 = vshrl.u32 %v540, 7
      %v542 = vsub.s32 %v539, %v541
      %v543 = vrot.slane %v536, %v542
      %v545 = vunpack.c.l.s4 1966171168
      %v546 = vunpack.c.0.s8 %v545
      %v547 = vlaneseq
      %v548 = vshrl.u32 %v547, 7
      %v549 = vsub.s32 %v546, %v548
      %v550 = vrot.slane %v543, %v549
      %vm551 = vcmp.ne.s32.totalorder %v550, 0
      %vm552 = vmand %vm533, %vm551
      %v553 = vlaneseq
      %v554 = vshrl.u32 %v553, 7
      %v555 = vadd.s32 %v554, 8
      %v556 = vadd.s32 %v554, 16
      %v557 = vlaneseq
      %v558 = vshrl.u32 %v557, 7
      %v559 = vsub.s32 0, %v558
      %v560 = vrot.slane %v532, %v559
      %v561 = vlaneseq
      %v562 = vshrl.u32 %v561, 7
      %v563 = vsub.s32 1, %v562
      %v564 = vrot.slane %v532, %v563
      %vm565 = vcmp.eq.s32.totalorder %v554, %v560
      %vm566 = vcmp.eq.s32.totalorder %v554, %v564
      %vm567 = vcmp.eq.s32.totalorder %v555, %v560
      %vm568 = vcmp.eq.s32.totalorder %v555, %v564
      %vm569 = vcmp.eq.s32.totalorder %v556, %v560
      %vm570 = vcmp.eq.s32.totalorder %v556, %v564
      %vm571 = vcmp.eq.s32.totalorder %v534, 1
      %vm572 = vcmp.eq.s32.totalorder %v535, 1
      %vm573 = vmand %vm565, %vm571
      %vm574 = vmand %vm566, %vm572
      %vm575 = vmand %vm567, %vm571
      %vm576 = vmand %vm568, %vm572
      %vm577 = vmand %vm569, %vm571
      %vm578 = vmand %vm570, %vm572
      %v579 = vsel %vm573, 1, 0
      %v580 = vsel %vm574, 1, 0
      %v581 = vsel %vm575, 1, 0
      %v582 = vsel %vm576, 1, 0
      %v583 = vsel %vm577, 1, 0
      %v584 = vsel %vm578, 1, 0
      %v585 = vcvt.s32.f32 %v579
      %v586 = vcvt.s32.f32 %v580
      %v587 = vcvt.s32.f32 %v581
      %v588 = vcvt.s32.f32 %v582
      %v589 = vcvt.s32.f32 %v583
      %v590 = vcvt.s32.f32 %v584
      %v591 = vld [vmem:[%s502] sm:$0xff]
      %v592 = vld [vmem:[%s502 + $0x8] sm:$0xff]
      %v593 = vld [vmem:[%s502 + $0x10] sm:$0x7]
      %v594 = vadd.f32 %v585, %v586
      %v595 = vadd.f32 %v587, %v588
      %v596 = vadd.f32 %v589, %v590
      %v597 = vadd.f32 %v591, %v594
      %v598 = vadd.f32 %v592, %v595
      %v599 = vadd.f32 %v593, %v596
      %600 = vst [vmem:[%s502] sm:$0xff] %v597
      %601 = vst [vmem:[%s502 + $0x8] sm:$0xff] %v598
      %602 = vst [vmem:[%s502 + $0x10] sm:$0x7] %v599
      %v603 = vld [vmem:[%s443] sm:$0xff]
      %v604 = vld [vmem:[%s443 + $0x8] sm:$0xff]
      %v605 = vld [vmem:[%s443 + $0x10] sm:$0xff]
      %v606 = vld [vmem:[%s443 + $0x18] sm:$0xff]
      %v607 = vld [vmem:[%s443 + $0x20] sm:$0x7]
      %v608 = vld [vmem:[%s443 + $0x28] sm:$0x7]
      %vm609 = vcmask 1042432
      %v610 = vsel %vm609, %v607, -inf
      %v611 = vmax.f32 %v603, %v610
      %v612 = vmax.f32 %v611, %v605
      %v613 = vrot.slane %v612, 4
      %v614 = vmax.f32 %v612, %v613
      %v615 = vrot.slane %v614, 2
      %v616 = vmax.f32 %v614, %v615
      %v617 = vrot.slane %v616, 1
      %v618 = vmax.f32 %v616, %v617
      %v619 = vsel %vm609, %v608, -inf
      %v620 = vmax.f32 %v604, %v619
      %v621 = vmax.f32 %v620, %v606
      %v622 = vrot.slane %v621, 4
      %v623 = vmax.f32 %v621, %v622
      %v624 = vrot.slane %v623, 2
      %v625 = vmax.f32 %v623, %v624
      %v626 = vrot.slane %v625, 1
      %v627 = vmax.f32 %v625, %v626
      %v628 = vsub.f32 %v603, %v618
      %v629 = vsub.f32 %v604, %v627
      %v630 = vsub.f32 %v605, %v618
      %v631 = vsub.f32 %v606, %v627
      %v632 = vsub.f32 %v607, %v618
      %v633 = vsub.f32 %v608, %v627
      %v634 = vmul.f32 %v628, 1.442695
      %v635 = vpow.pop %v634
      %v636 = vmul.f32 %v629, 1.442695
      %v637 = vpow.pop %v636
      %v638 = vmul.f32 %v630, 1.442695
      %v639 = vpow.pop %v638
      %v640 = vmul.f32 %v631, 1.442695
      %v641 = vpow.pop %v640
      %v642 = vmul.f32 %v632, 1.442695
      %v643 = vpow.pop %v642
      %v644 = vmul.f32 %v633, 1.442695
      %v645 = vpow.pop %v644
      %v646 = vadd.f32 %v635, %v639
      %v647 = vsel %vm609, %v643, 0.0
      %v648 = vadd.f32 %v646, %v647
      %v649 = vrot.slane %v648, 4
      %v650 = vadd.f32 %v648, %v649
      %v651 = vrot.slane %v650, 2
      %v652 = vadd.f32 %v650, %v651
      %v653 = vrot.slane %v652, 1
      %v654 = vadd.f32 %v652, %v653
      %v655 = vadd.f32 %v637, %v641
      %v656 = vsel %vm609, %v645, 0.0
      %v657 = vadd.f32 %v655, %v656
      %v658 = vrot.slane %v657, 4
      %v659 = vadd.f32 %v657, %v658
      %v660 = vrot.slane %v659, 2
      %v661 = vadd.f32 %v659, %v660
      %v662 = vrot.slane %v661, 1
      %v663 = vadd.f32 %v661, %v662
      %v664 = vrcp.pop %v654
      %v665 = vrcp.pop %v663
      %v666 = vmul.f32 %v635, %v664
      %v667 = vmul.f32 %v637, %v665
      %v668 = vmul.f32 %v639, %v664
      %v669 = vmul.f32 %v641, %v665
      %v670 = vmul.f32 %v643, %v664
      %v671 = vmul.f32 %v645, %v665
      %v672 = vsel %vm552, 1, 0
      %v673 = vlaneseq
      %v674 = vshrl.u32 %v673, 7
      %v675 = vsub.s32 0, %v674
      %v676 = vrot.slane %v672, %v675
      %v677 = vlaneseq
      %v678 = vshrl.u32 %v677, 7
      %v679 = vsub.s32 1, %v678
      %v680 = vrot.slane %v672, %v679
      %vm681 = vcmp.eq.s32.totalorder %v676, 1
      %vm682 = vcmp.eq.s32.totalorder %v680, 1
      %v683 = vsel %vm681, %v666, 0.0
      %v684 = vsel %vm682, %v667, 0.0
      %v685 = vsel %vm681, %v668, 0.0
      %v686 = vsel %vm682, %v669, 0.0
      %v687 = vsel %vm681, %v670, 0.0
      %v688 = vsel %vm682, %v671, 0.0
      %v689 = vld [vmem:[%s466] sm:$0xff]
      %v690 = vld [vmem:[%s466 + $0x8] sm:$0xff]
      %v691 = vld [vmem:[%s466 + $0x10] sm:$0x7]
      %v692 = vmul.f32 %v683, %v585
      %v693 = vmul.f32 %v684, %v586
      %v694 = vmul.f32 %v685, %v587
      %v695 = vmul.f32 %v686, %v588
      %v696 = vmul.f32 %v687, %v589
      %v697 = vmul.f32 %v688, %v590
      %v698 = vadd.f32 %v692, %v693
      %v699 = vadd.f32 %v694, %v695
      %v700 = vadd.f32 %v696, %v697
      %v701 = vadd.f32 %v689, %v698
      %v702 = vadd.f32 %v690, %v699
      %v703 = vadd.f32 %v691, %v700
      %704 = vst [vmem:[%s466] sm:$0xff] %v701
      %705 = vst [vmem:[%s466 + $0x8] sm:$0xff] %v702
      %706 = vst [vmem:[%s466 + $0x10] sm:$0x7] %v703
      %v707 = vld [vmem:[%s475] sm:$0xff]
      %v708 = vld [vmem:[%s475 + $0x8] sm:$0xff]
      %v709 = vld [vmem:[%s475 + $0x10] sm:$0x7]
      %v710 = vadd.f32 %v683, %v684
      %v711 = vadd.f32 %v685, %v686
      %v712 = vadd.f32 %v687, %v688
      %v713 = vadd.f32 %v707, %v710
      %v714 = vadd.f32 %v708, %v711
      %v715 = vadd.f32 %v709, %v712
      %716 = vst [vmem:[%s475] sm:$0xff] %v713
      %717 = vst [vmem:[%s475 + $0x8] sm:$0xff] %v714
      %718 = vst [vmem:[%s475 + $0x10] sm:$0x7] %v715
      %v719 = vld [vmem:[%s455] sm:$0xff]
      %v720 = vld [vmem:[%s455 + $0x8] sm:$0xff]
      %v721 = vld [vmem:[%s455 + $0x10] sm:$0xff]
      %v722 = vld [vmem:[%s455 + $0x18] sm:$0xff]
      %v723 = vld [vmem:[%s455 + $0x20] sm:$0x7]
      %v724 = vld [vmem:[%s455 + $0x28] sm:$0x7]
      %v725 = vsel %vm609, %v723, -inf
      %v726 = vmax.f32 %v719, %v725
      %v727 = vmax.f32 %v726, %v721
      %v728 = vrot.slane %v727, 4
      %v729 = vmax.f32 %v727, %v728
      %v730 = vrot.slane %v729, 2
      %v731 = vmax.f32 %v729, %v730
      %v732 = vrot.slane %v731, 1
      %v733 = vmax.f32 %v731, %v732
      %v734 = vsel %vm609, %v724, -inf
      %v735 = vmax.f32 %v720, %v734
      %v736 = vmax.f32 %v735, %v722
      %v737 = vrot.slane %v736, 4
      %v738 = vmax.f32 %v736, %v737
      %v739 = vrot.slane %v738, 2
      %v740 = vmax.f32 %v738, %v739
      %v741 = vrot.slane %v740, 1
      %v742 = vmax.f32 %v740, %v741
      %v743 = vsub.f32 %v719, %v733
      %v744 = vsub.f32 %v720, %v742
      %v745 = vsub.f32 %v721, %v733
      %v746 = vsub.f32 %v722, %v742
      %v747 = vsub.f32 %v723, %v733
      %v748 = vsub.f32 %v724, %v742
      %v749 = vmul.f32 %v743, 1.442695
      %v750 = vpow.pop %v749
      %v751 = vmul.f32 %v744, 1.442695
      %v752 = vpow.pop %v751
      %v753 = vmul.f32 %v745, 1.442695
      %v754 = vpow.pop %v753
      %v755 = vmul.f32 %v746, 1.442695
      %v756 = vpow.pop %v755
      %v757 = vmul.f32 %v747, 1.442695
      %v758 = vpow.pop %v757
      %v759 = vmul.f32 %v748, 1.442695
      %v760 = vpow.pop %v759
      %v761 = vadd.f32 %v750, %v754
      %v762 = vsel %vm609, %v758, 0.0
      %v763 = vadd.f32 %v761, %v762
      %v764 = vrot.slane %v763, 4
      %v765 = vadd.f32 %v763, %v764
      %v766 = vrot.slane %v765, 2
      %v767 = vadd.f32 %v765, %v766
      %v768 = vrot.slane %v767, 1
      %v769 = vadd.f32 %v767, %v768
      %v770 = vadd.f32 %v752, %v756
      %v771 = vsel %vm609, %v760, 0.0
      %v772 = vadd.f32 %v770, %v771
      %v773 = vrot.slane %v772, 4
      %v774 = vadd.f32 %v772, %v773
      %v775 = vrot.slane %v774, 2
      %v776 = vadd.f32 %v774, %v775
      %v777 = vrot.slane %v776, 1
      %v778 = vadd.f32 %v776, %v777
      %v779 = vrcp.pop %v769
      %v780 = vrcp.pop %v778
      %v781 = vmul.f32 %v750, %v779
      %v782 = vmul.f32 %v752, %v780
      %v783 = vmul.f32 %v754, %v779
      %v784 = vmul.f32 %v756, %v780
      %v785 = vmul.f32 %v758, %v779
      %v786 = vmul.f32 %v760, %v780
      %v787 = vsel %vm681, %v781, 0.0
      %v788 = vsel %vm682, %v782, 0.0
      %v789 = vsel %vm681, %v783, 0.0
      %v790 = vsel %vm682, %v784, 0.0
      %v791 = vsel %vm681, %v785, 0.0
      %v792 = vsel %vm682, %v786, 0.0
      %v793 = vld [vmem:[%s484] sm:$0xff]
      %v794 = vld [vmem:[%s484 + $0x8] sm:$0xff]
      %v795 = vld [vmem:[%s484 + $0x10] sm:$0x7]
      %v796 = vmul.f32 %v787, %v585
      %v797 = vmul.f32 %v788, %v586
      %v798 = vmul.f32 %v789, %v587
      %v799 = vmul.f32 %v790, %v588
      %v800 = vmul.f32 %v791, %v589
      %v801 = vmul.f32 %v792, %v590
      %v802 = vadd.f32 %v796, %v797
      %v803 = vadd.f32 %v798, %v799
      %v804 = vadd.f32 %v800, %v801
      %v805 = vadd.f32 %v793, %v802
      %v806 = vadd.f32 %v794, %v803
      %v807 = vadd.f32 %v795, %v804
      %808 = vst [vmem:[%s484] sm:$0xff] %v805
      %809 = vst [vmem:[%s484 + $0x8] sm:$0xff] %v806
      %810 = vst [vmem:[%s484 + $0x10] sm:$0x7] %v807
      %v811 = vld [vmem:[%s493] sm:$0xff]
      %v812 = vld [vmem:[%s493 + $0x8] sm:$0xff]
      %v813 = vld [vmem:[%s493 + $0x10] sm:$0x7]
      %v814 = vadd.f32 %v787, %v788
      %v815 = vadd.f32 %v789, %v790
      %v816 = vadd.f32 %v791, %v792
      %v817 = vadd.f32 %v811, %v814
      %v818 = vadd.f32 %v812, %v815
      %v819 = vadd.f32 %v813, %v816
      %820 = vst [vmem:[%s493] sm:$0xff] %v817
      %821 = vst [vmem:[%s493 + $0x8] sm:$0xff] %v818
      %822 = vst [vmem:[%s493 + $0x10] sm:$0x7] %v819
      %p823 = scmp.lt.s32.totalorder %s24, 1
      %s824 = scalar_select %p823, %s24, 1
      %p825 = scmp.lt.s32.totalorder %s25, 0
      %s826 = scalar_select %p825, %s25, 0
      %s827 = smul.addr %s826, 3
      %s828 = smul.addr %s824, 3
      %s829 = sadd.s32 %s827, %s828
      %s830 = smul.addr %s829, 8
      %s831 = scalar_lea.vmem %s3, %s830
      %p832 = scmp.lt.s32.totalorder %s24, 1
      %s833 = scalar_select %p832, %s24, 1
      %p834 = scmp.lt.s32.totalorder %s25, 0
      %s835 = scalar_select %p834, %s25, 0
      %s836 = smul.addr %s835, 3
      %s837 = smul.addr %s833, 3
      %s838 = sadd.s32 %s836, %s837
      %s839 = smul.addr %s838, 8
      %s840 = scalar_lea.vmem %s4, %s839
      %p841 = scmp.lt.s32.totalorder %s24, 1
      %s842 = scalar_select %p841, %s24, 1
      %p843 = scmp.lt.s32.totalorder %s25, 0
      %s844 = scalar_select %p843, %s25, 0
      %s845 = smul.addr %s844, 3
      %s846 = smul.addr %s842, 3
      %s847 = sadd.s32 %s845, %s846
      %s848 = smul.addr %s847, 8
      %s849 = scalar_lea.vmem %s5, %s848
      %p850 = scmp.lt.s32.totalorder %s24, 1
      %s851 = scalar_select %p850, %s24, 1
      %p852 = scmp.lt.s32.totalorder %s25, 0
      %s853 = scalar_select %p852, %s25, 0
      %s854 = smul.addr %s853, 3
      %s855 = smul.addr %s851, 3
      %s856 = sadd.s32 %s854, %s855
      %s857 = smul.addr %s856, 8
      %s858 = scalar_lea.vmem %s6, %s857
      %p859 = scmp.lt.s32.totalorder %s24, 1
      %s860 = scalar_select %p859, %s24, 1
      %p861 = scmp.lt.s32.totalorder %s25, 0
      %s862 = scalar_select %p861, %s25, 0
      %s863 = smul.addr %s862, 3
      %s864 = smul.addr %s860, 3
      %s865 = sadd.s32 %s863, %s864
      %s866 = smul.addr %s865, 8
      %s867 = scalar_lea.vmem %s7, %s866
      // Predicated region
      $region37: #{tpu_custom_call.1} parent=31 // pred_check
        %p868 = pneg %p148
      $region38: #{tpu_custom_call.1} parent=31 // pred_check_branch
        %870 = sbr.rel (%p868) target = $region40
      $region39: #{tpu_custom_call.1} parent=31 // pred_region
        _
      $region40: #{tpu_custom_call.1} parent=31 // pred_fallthru
        _
      // Predicated region
      $region41: #{tpu_custom_call.1} parent=31 // pred_check
        %p871 = pneg %p176
      $region42: #{tpu_custom_call.1} parent=31 // pred_check_branch
        %873 = sbr.rel (%p871) target = $region44
      $region43: #{tpu_custom_call.1} parent=31 // pred_region
        _
      $region44: #{tpu_custom_call.1} parent=31 // pred_fallthru
        _
      // Predicated region
      $region45: #{tpu_custom_call.1} parent=31 // pred_check
        %p874 = pneg %p204
      $region46: #{tpu_custom_call.1} parent=31 // pred_check_branch
        %876 = sbr.rel (%p874) target = $region48
      $region47: #{tpu_custom_call.1} parent=31 // pred_region
        _
      $region48: #{tpu_custom_call.1} parent=31 // pred_fallthru
        _
      // Predicated region
      $region49: #{tpu_custom_call.1} parent=31 // pred_check
        %p877 = pneg %p232
      $region50: #{tpu_custom_call.1} parent=31 // pred_check_branch
        %879 = sbr.rel (%p877) target = $region52
      $region51: #{tpu_custom_call.1} parent=31 // pred_region
        _
      $region52: #{tpu_custom_call.1} parent=31 // pred_fallthru
        _
      // Predicated region
      $region53: #{tpu_custom_call.1} parent=31 // pred_check
        %p880 = pneg %p260
      $region54: #{tpu_custom_call.1} parent=31 // pred_check_branch
        %882 = sbr.rel (%p880) target = $region56
      $region55: #{tpu_custom_call.1} parent=31 // pred_region
        _
      $region56: #{tpu_custom_call.1} parent=31 // pred_fallthru
        _
    $region32: #{tpu_custom_call.1} parent=5 // pred_fallthru
      _
    %p883 = scmp.le.s32.totalorder 2, %s14
    // Predicated region
    $region57: #{tpu_custom_call.1} parent=5 // pred_check
      %p884 = pneg %p883
    $region58: #{tpu_custom_call.1} parent=5 // pred_check_branch
      %886 = sbr.rel (%p884) target = $region60
    $region59: #{tpu_custom_call.1} parent=5 // pred_region
      %s887 = ssub.s32 %s14, 2
      // Predicated region
      $region61: #{tpu_custom_call.1} parent=59 // pred_check
        %p888 = pneg %p154
      $region62: #{tpu_custom_call.1} parent=59 // pred_check_branch
        %890 = sbr.rel (%p888) target = $region64
      $region63: #{tpu_custom_call.1} parent=59 // pred_region
        %p891 = scmp.lt.s32.totalorder %s27, 1
        %s892 = scalar_select %p891, %s27, 1
        %p893 = scmp.lt.s32.totalorder %s28, 0
        %s894 = scalar_select %p893, %s28, 0
        %s895 = smul.addr %s894, 3
        %s896 = smul.addr %s892, 3
        %s897 = sadd.s32 %s895, %s896
        %s898 = smul.addr %s897, 8
        %s899 = scalar_lea.vmem %s3, %s898
      $region64: #{tpu_custom_call.1} parent=59 // pred_fallthru
        _
      // Predicated region
      $region65: #{tpu_custom_call.1} parent=59 // pred_check
        %p900 = pneg %p182
      $region66: #{tpu_custom_call.1} parent=59 // pred_check_branch
        %902 = sbr.rel (%p900) target = $region68
      $region67: #{tpu_custom_call.1} parent=59 // pred_region
        %p903 = scmp.lt.s32.totalorder %s27, 1
        %s904 = scalar_select %p903, %s27, 1
        %p905 = scmp.lt.s32.totalorder %s28, 0
        %s906 = scalar_select %p905, %s28, 0
        %s907 = smul.addr %s906, 3
        %s908 = smul.addr %s904, 3
        %s909 = sadd.s32 %s907, %s908
        %s910 = smul.addr %s909, 8
        %s911 = scalar_lea.vmem %s4, %s910
      $region68: #{tpu_custom_call.1} parent=59 // pred_fallthru
        _
      // Predicated region
      $region69: #{tpu_custom_call.1} parent=59 // pred_check
        %p912 = pneg %p210
      $region70: #{tpu_custom_call.1} parent=59 // pred_check_branch
        %914 = sbr.rel (%p912) target = $region72
      $region71: #{tpu_custom_call.1} parent=59 // pred_region
        %p915 = scmp.lt.s32.totalorder %s27, 1
        %s916 = scalar_select %p915, %s27, 1
        %p917 = scmp.lt.s32.totalorder %s28, 0
        %s918 = scalar_select %p917, %s28, 0
        %s919 = smul.addr %s918, 3
        %s920 = smul.addr %s916, 3
        %s921 = sadd.s32 %s919, %s920
        %s922 = smul.addr %s921, 8
        %s923 = scalar_lea.vmem %s5, %s922
      $region72: #{tpu_custom_call.1} parent=59 // pred_fallthru
        _
      // Predicated region
      $region73: #{tpu_custom_call.1} parent=59 // pred_check
        %p924 = pneg %p238
      $region74: #{tpu_custom_call.1} parent=59 // pred_check_branch
        %926 = sbr.rel (%p924) target = $region76
      $region75: #{tpu_custom_call.1} parent=59 // pred_region
        %p927 = scmp.lt.s32.totalorder %s27, 1
        %s928 = scalar_select %p927, %s27, 1
        %p929 = scmp.lt.s32.totalorder %s28, 0
        %s930 = scalar_select %p929, %s28, 0
        %s931 = smul.addr %s930, 3
        %s932 = smul.addr %s928, 3
        %s933 = sadd.s32 %s931, %s932
        %s934 = smul.addr %s933, 8
        %s935 = scalar_lea.vmem %s6, %s934
      $region76: #{tpu_custom_call.1} parent=59 // pred_fallthru
        _
      // Predicated region
      $region77: #{tpu_custom_call.1} parent=59 // pred_check
        %p936 = pneg %p266
      $region78: #{tpu_custom_call.1} parent=59 // pred_check_branch
        %938 = sbr.rel (%p936) target = $region80
      $region79: #{tpu_custom_call.1} parent=59 // pred_region
        %p939 = scmp.lt.s32.totalorder %s27, 1
        %s940 = scalar_select %p939, %s27, 1
        %p941 = scmp.lt.s32.totalorder %s28, 0
        %s942 = scalar_select %p941, %s28, 0
        %s943 = smul.addr %s942, 3
        %s944 = smul.addr %s940, 3
        %s945 = sadd.s32 %s943, %s944
        %s946 = smul.addr %s945, 8
        %s947 = scalar_lea.vmem %s7, %s946
      $region80: #{tpu_custom_call.1} parent=59 // pred_fallthru
        _
    $region60: #{tpu_custom_call.1} parent=5 // pred_fallthru
      _
  $region6: #{tpu_custom_call.1} parent=0 // loop_footer
    %s18 = sadd.s32 1, %s14
  $region7: #{tpu_custom_call.1} parent=0 // loop_footer_branch
    %13 = sbr.rel target = $region3
  $region8: #{tpu_custom_call.1} parent=0 // loop_exit
    _

</llo_original>
